<compile_context>
chip_gen: v5e
topology: v5e:2x2
jax: 0.10.0
libtpu: 0.0.40
codegen_flags: <defaults>
</compile_context>

<pallas_src>
import functools

import jax
import jax.numpy as jnp
from jax.experimental import pallas as pl
from jax.experimental.pallas import tpu as pltpu

LANE = 128
SUBTILE = 16  # batch-tile granularity; multiple of 8 (f32) and 16 (bf16) sublane tiles


def _round_up(x, m):
    return (x + m - 1) // m * m


def _qnet_kernel(x_ref, w1_ref, b1_ref, w2_ref, b2_ref, out_ref):
    # h = relu(x @ W1 + b1); matmuls accumulate in f32, bias/ReLU in f32.
    h = jnp.dot(x_ref[...], w1_ref[...], preferred_element_type=jnp.float32)
    h = jnp.maximum(h + b1_ref[...], 0.0).astype(jnp.bfloat16)
    # y = h @ W2 + b2
    y = jnp.dot(h, w2_ref[...], preferred_element_type=jnp.float32)
    out_ref[...] = (y + b2_ref[...]).astype(out_ref.dtype)


def prepare_params(w1, b1, w2, b2):
    """One-time parameter prep (hoisted out of the per-step forward).

    w1: (input_size, hidden_size)   -- already transposed vs torch (out, in)
    b1: (hidden_size,)
    w2: (hidden_size, output_size)
    b2: (output_size,)

    Returns bf16 weights with the hidden dim zero-padded to 128 lanes and
    f32 row-vector biases.
    """
    K, H = w1.shape
    Hw, N = w2.shape
    assert H == Hw
    h_pad = _round_up(H, LANE)
    w1p = jnp.pad(w1, ((0, 0), (0, h_pad - H))).astype(jnp.bfloat16)
    b1p = jnp.pad(b1.reshape(1, H), ((0, 0), (0, h_pad - H))).astype(jnp.float32)
    w2p = jnp.pad(w2, ((0, h_pad - H), (0, 0))).astype(jnp.bfloat16)
    b2p = b2.reshape(1, N).astype(jnp.float32)
    return w1p, b1p, w2p, b2p


@functools.partial(jax.jit, static_argnames=("batch_tile",))
def linear_qnet_forward(x, w1p, b1p, w2p, b2p, *, batch_tile=4096):
    """Fused forward pass of LinearQNet.

    x:   (B, input_size) float32
    w1p: (input_size, H_pad) bf16     (from prepare_params)
    b1p: (1, H_pad) float32
    w2p: (H_pad, output_size) bf16
    b2p: (1, output_size) float32
    returns (B, output_size) float32
    """
    B, K = x.shape
    Kw, H_pad = w1p.shape
    _, N = w2p.shape
    assert K == Kw

    # bf16 activations: halves x DMA; accumulation stays f32 inside the kernel.
    xb = x.astype(jnp.bfloat16)

    cost = pl.CostEstimate(
        flops=2 * B * (K * H_pad + H_pad * N),
        transcendentals=0,
        bytes_accessed=(xb.size * 2 + w1p.size * 2 + w2p.size * 2
                        + b1p.size * 4 + b2p.size * 4 + B * N * 4),
    )
    out_shape = jax.ShapeDtypeStruct((B, N), jnp.float32)

    if B <= batch_tile:
        # Gridless fast path: whole arrays as VMEM-resident refs, no pipeline
        # prologue/epilogue. Working set is tiny at these shapes (fits the
        # 32 MiB scoped default on v7x with huge margin).
        # TODO(synk): for very small B this is still dispatch/latency bound;
        # callers may prefer a plain XLA dot+relu+dot below the crossover.
        vmem = pl.BlockSpec(memory_space=pltpu.MemorySpace.VMEM)
        return pl.pallas_call(
            _qnet_kernel,
            out_shape=out_shape,
            in_specs=[vmem, vmem, vmem, vmem, vmem],
            out_specs=vmem,
            cost_estimate=cost,
        )(xb, w1p, b1p, w2p, b2p)

    # Batch-tiled path: x / out stream per tile, weights & biases use a
    # constant (0, 0) index_map so they stay VMEM-resident across the grid.
    nt = pl.cdiv(B, batch_tile)
    if nt % 2:
        nt += 1  # even tile count balances v7x's two TensorCores (no-op on 1-TC chips)
    TB = _round_up(pl.cdiv(B, nt), SUBTILE)
    num_tiles = pl.cdiv(B, TB)  # ragged last tile handled by Pallas; no x batch-pad

    return pl.pallas_call(
        _qnet_kernel,
        out_shape=out_shape,
        grid=(num_tiles,),
        in_specs=[
            pl.BlockSpec((TB, K), lambda i: (i, 0)),       # x streams per tile
            pl.BlockSpec((K, H_pad), lambda i: (0, 0)),    # weights resident
            pl.BlockSpec((1, H_pad), lambda i: (0, 0)),
            pl.BlockSpec((H_pad, N), lambda i: (0, 0)),
            pl.BlockSpec((1, N), lambda i: (0, 0)),
        ],
        # Full-dim last axis (N) -> no 128-lane padding of the output, ~32x
        # less writeback for N=4. Masked vst is a small fixed per-step cost.
        out_specs=pl.BlockSpec((TB, N), lambda i: (i, 0)),
        compiler_params=pltpu.CompilerParams(
            dimension_semantics=("parallel",)),
        cost_estimate=cost,
    )(xb, w1p, b1p, w2p, b2p)


def reference_forward(x, w1, b1, w2, b2):
    h = jnp.maximum(x @ w1 + b1.reshape(1, -1), 0.0)
    return h @ w2 + b2.reshape(1, -1)


if __name__ == "__main__":
    # Shapes implied by LinearQNet(input_size, hidden_size, output_size).
    batch, input_size, hidden_size, output_size = 8, 16, 32, 4

    key = jax.random.PRNGKey(0)
    kx, kw1, kb1, kw2, kb2, kxb = jax.random.split(key, 6)

    x = jax.random.normal(kx, (batch, input_size), dtype=jnp.float32)

    # Deterministic parameter init (Kaiming-uniform-ish bounds like PyTorch).
    bound1 = 1.0 / jnp.sqrt(input_size)
    w1 = jax.random.uniform(kw1, (input_size, hidden_size),
                            minval=-bound1, maxval=bound1, dtype=jnp.float32)
    b1 = jax.random.uniform(kb1, (hidden_size,),
                            minval=-bound1, maxval=bound1, dtype=jnp.float32)
    bound2 = 1.0 / jnp.sqrt(hidden_size)
    w2 = jax.random.uniform(kw2, (hidden_size, output_size),
                            minval=-bound2, maxval=bound2, dtype=jnp.float32)
    b2 = jax.random.uniform(kb2, (output_size,),
                            minval=-bound2, maxval=bound2, dtype=jnp.float32)

    # Pad + cast weights once (hoisted out of the per-step forward).
    params = prepare_params(w1, b1, w2, b2)

    # bf16 MXU path vs f32 reference -> tolerance sized for bf16 rounding.
    TOL = dict(atol=5e-2, rtol=5e-2)

    # Small-batch (gridless, whole-array VMEM) path.
    out = linear_qnet_forward(x, *params)
    out = jax.block_until_ready(out)
    ref = reference_forward(x, w1, b1, w2, b2)
    assert out.shape == (batch, output_size)
    assert jnp.allclose(out, ref, **TOL), "mismatch (small B)"

    # Larger-batch (batch-tiled, parallel grid, ragged last tile) path.
    big_batch = 300
    xbig = jax.random.normal(kxb, (big_batch, input_size), dtype=jnp.float32)
    outb = linear_qnet_forward(xbig, *params, batch_tile=128)
    outb = jax.block_until_ready(outb)
    refb = reference_forward(xbig, w1, b1, w2, b2)
    assert outb.shape == (big_batch, output_size)
    assert jnp.all(jnp.isfinite(outb)), "non-finite rows leaked from ragged tile"
    assert jnp.allclose(outb, refb, **TOL), "mismatch (big B)"

    print("KERNEL_OK")
</pallas_src>

<mosaic_0001>
module attributes {stable_mosaic.version = 11 : i64} {
  func.func @_qnet_kernel(%arg0: memref<8x16xbf16, #tpu.memory_space<vmem>>, %arg1: memref<16x128xbf16, #tpu.memory_space<vmem>>, %arg2: memref<1x128xf32, #tpu.memory_space<vmem>>, %arg3: memref<128x4xbf16, #tpu.memory_space<vmem>>, %arg4: memref<1x4xf32, #tpu.memory_space<vmem>>, %arg5: memref<8x4xf32, #tpu.memory_space<vmem>>) attributes {dimension_semantics = [], scalar_prefetch = 0 : i64, scratch_operands = 0 : i64, tpu.core_type = #tpu.core_type<tc>} {
    %c0 = arith.constant 0 : index
    %c0_0 = arith.constant 0 : index
    %0 = vector.load %arg0[%c0, %c0_0] : memref<8x16xbf16, #tpu.memory_space<vmem>>, vector<8x16xbf16>
    %c0_1 = arith.constant 0 : index
    %c0_2 = arith.constant 0 : index
    %1 = vector.load %arg1[%c0_1, %c0_2] : memref<16x128xbf16, #tpu.memory_space<vmem>>, vector<16x128xbf16>
    %cst = arith.constant dense<0.000000e+00> : vector<8x128xf32>
    %2 = tpu.matmul %0, %1, %cst {dimension_numbers = #tpu.dot_dimension_numbers<[1], [0], [0], [1], [0, 0, 1, 1], [], []>} : vector<8x16xbf16>, vector<16x128xbf16>, vector<8x128xf32> -> vector<8x128xf32>
    %c0_3 = arith.constant 0 : index
    %c0_4 = arith.constant 0 : index
    %3 = vector.load %arg2[%c0_3, %c0_4] : memref<1x128xf32, #tpu.memory_space<vmem>>, vector<1x128xf32>
    %4 = vector.broadcast %3 : vector<1x128xf32> to vector<8x128xf32>
    %5 = arith.addf %2, %4 : vector<8x128xf32>
    %cst_5 = arith.constant 0.000000e+00 : f32
    %6 = vector.broadcast %cst_5 : f32 to vector<8x128xf32>
    %7 = arith.maximumf %5, %6 : vector<8x128xf32>
    %8 = arith.truncf %7 : vector<8x128xf32> to vector<8x128xbf16>
    %c0_6 = arith.constant 0 : index
    %c0_7 = arith.constant 0 : index
    %9 = vector.load %arg3[%c0_6, %c0_7] : memref<128x4xbf16, #tpu.memory_space<vmem>>, vector<128x4xbf16>
    %cst_8 = arith.constant dense<0.000000e+00> : vector<8x4xf32>
    %10 = tpu.matmul %8, %9, %cst_8 {dimension_numbers = #tpu.dot_dimension_numbers<[1], [0], [0], [1], [0, 0, 1, 1], [], []>} : vector<8x128xbf16>, vector<128x4xbf16>, vector<8x4xf32> -> vector<8x4xf32>
    %c0_9 = arith.constant 0 : index
    %c0_10 = arith.constant 0 : index
    %11 = vector.load %arg4[%c0_9, %c0_10] : memref<1x4xf32, #tpu.memory_space<vmem>>, vector<1x4xf32>
    %12 = vector.broadcast %11 : vector<1x4xf32> to vector<8x4xf32>
    %13 = arith.addf %10, %12 : vector<8x4xf32>
    %c0_11 = arith.constant 0 : index
    %c0_12 = arith.constant 0 : index
    %14 = vector.load %arg5[%c0_11, %c0_12] : memref<8x4xf32, #tpu.memory_space<vmem>>, vector<8x4xf32>
    tpu.vector_store %arg5[%c0_11, %c0_12], %13 {strides = array<i32>} : memref<8x4xf32, #tpu.memory_space<vmem>>, vector<8x4xf32>,
    return
  }
}

</mosaic_0001>

<llo_original>
// kernel: linear_qnet_forward.1
$region0: #{linear_qnet_forward.1}
  #allocation0 [shape = 'u32[]', space=smem, size = 0x4, offset = 0x4, fixed_abs, tag = 'smem constant byte address 0x4 - core index']
  #allocation1 [shape = 'u32[72,128]{1,0:T(1,128)}', space=vmem, size = 0x9000, scoped, tag = 'internal scratch']
  %s0 = inlined_call_operand.vmem [shape: bf16[8,16], index: 0, kind: input, shape index: {}]
  %s1 = inlined_call_operand.vmem [shape: bf16[16,128], index: 1, kind: input, shape index: {}]
  %s2 = inlined_call_operand.vmem [shape: f32[1,128], index: 2, kind: input, shape index: {}]
  %s3 = inlined_call_operand.vmem [shape: bf16[128,4], index: 3, kind: input, shape index: {}]
  %s4 = inlined_call_operand.vmem [shape: f32[1,4], index: 4, kind: input, shape index: {}]
  %s5 = inlined_call_operand.vmem [shape: f32[8,4], index: 5, kind: output, shape index: {}]
  %s6 = sld [smem:[#allocation0]]
  $region30: #{linear_qnet_forward.1} parent=0
    _
  %s8 = ssub.s32 1, %s6
  %s9 = scalar_select 0, %s8, %s6
  // Predicated region
  $region2: #{linear_qnet_forward.1} parent=0 // pred_check
    _
  $region3: #{linear_qnet_forward.1} parent=0 // pred_check_branch
    %11 = sbr.rel (0) target = $region5
  $region4: #{linear_qnet_forward.1} parent=0 // pred_region
    _
  $region5: #{linear_qnet_forward.1} parent=0 // pred_fallthru
    _
  // Predicated region
  $region6: #{linear_qnet_forward.1} parent=0 // pred_check
    _
  $region7: #{linear_qnet_forward.1} parent=0 // pred_check_branch
    %13 = sbr.rel (0) target = $region9
  $region8: #{linear_qnet_forward.1} parent=0 // pred_region
    _
  $region9: #{linear_qnet_forward.1} parent=0 // pred_fallthru
    _
  // Predicated region
  $region10: #{linear_qnet_forward.1} parent=0 // pred_check
    _
  $region11: #{linear_qnet_forward.1} parent=0 // pred_check_branch
    %15 = sbr.rel (0) target = $region13
  $region12: #{linear_qnet_forward.1} parent=0 // pred_region
    _
  $region13: #{linear_qnet_forward.1} parent=0 // pred_fallthru
    _
  // Predicated region
  $region14: #{linear_qnet_forward.1} parent=0 // pred_check
    _
  $region15: #{linear_qnet_forward.1} parent=0 // pred_check_branch
    %17 = sbr.rel (0) target = $region17
  $region16: #{linear_qnet_forward.1} parent=0 // pred_region
    _
  $region17: #{linear_qnet_forward.1} parent=0 // pred_fallthru
    _
  // Predicated region
  $region18: #{linear_qnet_forward.1} parent=0 // pred_check
    _
  $region19: #{linear_qnet_forward.1} parent=0 // pred_check_branch
    %19 = sbr.rel (0) target = $region21
  $region20: #{linear_qnet_forward.1} parent=0 // pred_region
    _
  $region21: #{linear_qnet_forward.1} parent=0 // pred_fallthru
    _
  %v21 = vld [vmem:[%s0] sm:$0xf]
  %v22 = vld [vmem:[%s1] sm:$0xf]
  %v23 = vld [vmem:[%s1 + $0x4] sm:$0xf]
  %v24 = vld [vmem:[%s2] sm:$0x1]
  %v26 = vperm.slane %v24, 0
  %v30 = vunpack.c.l.b16 %v22
  %v31 = vunpack.c.l.b16 %v23
  %v32 = vpack.c.b16 %v31, %v30
  %vm34 = vcmask 130048
  %v36 = vsel %vm34, %v21, 0
  %38 = vmatpush.bf16.msra.mxu0 0
  %39 = vmatpush.bf16.msra.mxu0 0
  %40 = vmatpush.bf16.msra.mxu0 0
  %41 = vmatpush.bf16.msra.mxu0 0
  %42 = vmatpush.bf16.msra.mxu0 0
  %43 = vmatpush.bf16.msra.mxu0 0
  %44 = vmatpush.bf16.msra.mxu0 0
  %45 = vmatpush.bf16.msra.mxu0 %v32
  %46 = vmatmul.bf16.gmra.mxu0 %v36
  %v47 = vpop.f32.mrf.mxu0
  %v48 = vadd.f32 %v26, %v47
  %v49 = vpop.f32.mrf.mxu0
  %50 = vdwg.mxu0
  %v51 = vmax.f32 %v48, 0.0
  %v52 = vpack.c.bf16 %v51, %v51
  %v53 = vld [vmem:[%s3] sm:$0xf]
  %v54 = vld [vmem:[%s3 + $0x4] sm:$0xf]
  %v55 = vld [vmem:[%s3 + $0x8] sm:$0xf]
  %v56 = vld [vmem:[%s3 + $0xc] sm:$0xf]
  %v57 = vld [vmem:[%s3 + $0x10] sm:$0xf]
  %v58 = vld [vmem:[%s3 + $0x14] sm:$0xf]
  %v59 = vld [vmem:[%s3 + $0x18] sm:$0xf]
  %v60 = vld [vmem:[%s3 + $0x1c] sm:$0xf]
  %v61 = vld [vmem:[%s3 + $0x20] sm:$0xf]
  %v62 = vld [vmem:[%s3 + $0x24] sm:$0xf]
  %v63 = vld [vmem:[%s3 + $0x28] sm:$0xf]
  %v64 = vld [vmem:[%s3 + $0x2c] sm:$0xf]
  %v65 = vld [vmem:[%s3 + $0x30] sm:$0xf]
  %v66 = vld [vmem:[%s3 + $0x34] sm:$0xf]
  %v67 = vld [vmem:[%s3 + $0x38] sm:$0xf]
  %v68 = vld [vmem:[%s3 + $0x3c] sm:$0xf]
  %v69 = vld [vmem:[%s4] sm:$0x1]
  %v71 = vperm.slane %v69, 0
  %v89 = vunpack.c.l.b16 %v53
  %v90 = vunpack.c.l.b16 %v54
  %v91 = vunpack.c.l.b16 %v55
  %v92 = vunpack.c.l.b16 %v56
  %v93 = vunpack.c.l.b16 %v57
  %v94 = vunpack.c.l.b16 %v58
  %v95 = vunpack.c.l.b16 %v59
  %v96 = vunpack.c.l.b16 %v60
  %v97 = vunpack.c.l.b16 %v61
  %v98 = vunpack.c.l.b16 %v62
  %v99 = vunpack.c.l.b16 %v63
  %v100 = vunpack.c.l.b16 %v64
  %v101 = vunpack.c.l.b16 %v65
  %v102 = vunpack.c.l.b16 %v66
  %v103 = vunpack.c.l.b16 %v67
  %v104 = vunpack.c.l.b16 %v68
  %v105 = vpack.c.b16 %v90, %v89
  %v106 = vpack.c.b16 %v92, %v91
  %v107 = vpack.c.b16 %v94, %v93
  %v108 = vpack.c.b16 %v96, %v95
  %v109 = vpack.c.b16 %v98, %v97
  %v110 = vpack.c.b16 %v100, %v99
  %v111 = vpack.c.b16 %v102, %v101
  %v112 = vpack.c.b16 %v104, %v103
  %121 = vmatpush.bf16.msra.mxu0 %v112
  %122 = vmatpush.bf16.msra.mxu0 %v111
  %123 = vmatpush.bf16.msra.mxu0 %v110
  %124 = vmatpush.bf16.msra.mxu0 %v109
  %125 = vmatpush.bf16.msra.mxu0 %v108
  %126 = vmatpush.bf16.msra.mxu0 %v107
  %127 = vmatpush.bf16.msra.mxu0 %v106
  %128 = vmatpush.bf16.msra.mxu0 %v105
  %129 = vmatmul.bf16.gmra.mxu0 %v52
  %v130 = vpop.f32.mrf.mxu0
  %v131 = vadd.f32 %v71, %v130
  %v132 = vpop.f32.mrf.mxu0
  %133 = vdwg.mxu0
  %vm134 = vcmask 31744
  %135 = vst.msk [vmem:[%s5] sm:$0xff] %vm134, %v131
  // Predicated region
  $region22: #{linear_qnet_forward.1} parent=0 // pred_check
    _
  $region23: #{linear_qnet_forward.1} parent=0 // pred_check_branch
    %137 = sbr.rel (0) target = $region25
  $region24: #{linear_qnet_forward.1} parent=0 // pred_region
    _
  $region25: #{linear_qnet_forward.1} parent=0 // pred_fallthru
    _
  // Predicated region
  $region26: #{linear_qnet_forward.1} parent=0 // pred_check
    _
  $region27: #{linear_qnet_forward.1} parent=0 // pred_check_branch
    %139 = sbr.rel (0) target = $region29
  $region28: #{linear_qnet_forward.1} parent=0 // pred_region
    _
  $region29: #{linear_qnet_forward.1} parent=0 // pred_fallthru
    _

</llo_original>
